<compile_context>
chip_gen: v7x
topology: tpu7x:2x2x1
jax: 0.10.0
libtpu: 0.0.40
codegen_flags: <defaults>
</compile_context>

<pallas_src>
import functools

import jax
import jax.numpy as jnp
from jax.experimental import pallas as pl
from jax.experimental.pallas import tpu as pltpu

LANE = 128
SUBLANE = 8
_HI = jax.lax.Precision.HIGHEST


def _round_up(x, m):
    return (x + m - 1) // m * m


# ----------------------------------------------------------------------------
# Pallas kernels (operate on folded + lane-padded parameters)
# ----------------------------------------------------------------------------
def _m1_kernel(x_ref, wA_ref, bA_ref, wB_ref, bB_ref, wC_ref, bC_ref,
               wD_ref, bD_ref, wE_ref, bE_ref, out_ref):
    """Folded backbone-projection + M1 head.

    Layer A = (backbone @ fc1[0]) folded; B/C/D = fc1[2]/fc1[4]/fc1[6] (padded
    to 128 lanes); E = fc2[1].  ReLU after A, B, C and D (fc2's ReLU)."""
    f32 = jnp.float32
    h = jnp.dot(x_ref[...], wA_ref[...], preferred_element_type=f32) + bA_ref[...]
    h = jnp.maximum(h, 0.0)
    h = jnp.dot(h, wB_ref[...], preferred_element_type=f32) + bB_ref[...]
    h = jnp.maximum(h, 0.0)
    h = jnp.dot(h, wC_ref[...], preferred_element_type=f32) + bC_ref[...]
    h = jnp.maximum(h, 0.0)
    h = jnp.dot(h, wD_ref[...], preferred_element_type=f32) + bD_ref[...]   # latent
    h = jnp.maximum(h, 0.0)                                                 # fc2 ReLU
    out_ref[...] = jnp.dot(h, wE_ref[...], preferred_element_type=f32) + bE_ref[...]


def _m0_kernel(x_ref, w_ref, b_ref, out_ref):
    """Folded backbone-projection + M0 head.

    Eval-mode Dropout(0.5) is identity, so the mean over 5 identical fc
    branches == fc(x); the redundant sum/divide is removed."""
    out_ref[...] = (jnp.dot(x_ref[...], w_ref[...],
                            preferred_element_type=jnp.float32) + b_ref[...])


# ----------------------------------------------------------------------------
# Parameter init (deterministic, torch.nn.Linear-style uniform(+-1/sqrt(fan_in)))
# ----------------------------------------------------------------------------
def _linear_params(key, fan_in, fan_out):
    kw, kb = jax.random.split(key)
    bound = 1.0 / jnp.sqrt(jnp.float32(fan_in))
    w = jax.random.uniform(kw, (fan_in, fan_out), jnp.float32, -bound, bound)
    b = jax.random.uniform(kb, (1, fan_out), jnp.float32, -bound, bound)
    return w, b


def init_params(key, in_dim, out_features, model="M1"):
    keys = jax.random.split(key, 8)
    params = []
    # backbone stand-in: in_dim -> 1000
    params += list(_linear_params(keys[0], in_dim, 1000))
    if model == "M1":
        params += list(_linear_params(keys[1], 1000, 128))
        params += list(_linear_params(keys[2], 128, 128))
        params += list(_linear_params(keys[3], 128, 64))
        params += list(_linear_params(keys[4], 64, 32))
        params += list(_linear_params(keys[5], 32, out_features))
    elif model == "M0":
        params += list(_linear_params(keys[1], 1000, out_features))
    else:
        raise ValueError(f"Model {model} not supported")
    return params


# ----------------------------------------------------------------------------
# Fold + pad + quantize parameters (done once, outside the per-call path)
# ----------------------------------------------------------------------------
def fold_and_pad_params(params, in_dim, out_features, model="M1",
                        weight_dtype=jnp.bfloat16):
    """Fold the backbone projection into the first head layer (exact algebra,
    no intervening nonlinearity), zero-pad every feature dim to a multiple of
    128 lanes, and cast weights to bf16 (biases stay f32)."""
    in_pad = _round_up(in_dim, LANE)
    out_pad = _round_up(out_features, LANE)

    def pad_w(w, r, c):
        return jnp.zeros((r, c), jnp.float32).at[:w.shape[0], :w.shape[1]].set(w)

    def pad_b(b, c):
        return jnp.zeros((1, c), jnp.float32).at[:, :b.shape[1]].set(b)

    w0, b0 = params[0], params[1]                       # [in_dim,1000], [1,1000]
    if model == "M1":
        w1, b1, w2, b2, w3, b3, w4, b4, w5, b5 = params[2:]
        wA = jnp.matmul(w0, w1, precision=_HI)          # [in_dim, 128]
        bA = jnp.matmul(b0, w1, precision=_HI) + b1     # [1, 128]
        kp = [pad_w(wA, in_pad, 128), pad_b(bA, 128),
              pad_w(w2, 128, 128),    pad_b(b2, 128),
              pad_w(w3, 128, 128),    pad_b(b3, 128),
              pad_w(w4, 128, 128),    pad_b(b4, 128),
              pad_w(w5, 128, out_pad), pad_b(b5, out_pad)]
    elif model == "M0":
        wfc, bfc = params[2:]
        wF = jnp.matmul(w0, wfc, precision=_HI)         # [in_dim, out]
        bF = jnp.matmul(b0, wfc, precision=_HI) + bfc
        kp = [pad_w(wF, in_pad, out_pad), pad_b(bF, out_pad)]
    else:
        raise ValueError(f"Model {model} not supported")

    return [a.astype(weight_dtype) if i % 2 == 0 else a for i, a in enumerate(kp)]


# ----------------------------------------------------------------------------
# Wrapper
# ----------------------------------------------------------------------------
@functools.partial(jax.jit, static_argnames=("model", "out_features"))
def efficientnet_nn_forward(x, kparams, *, model="M1", out_features=8):
    """Forward pass of EfficientNetNN (fine_tune=False, eval mode)."""
    B = x.shape[0]
    x_flat = x.reshape(B, -1).astype(jnp.float32)      # NCHW -> [B, C*H*W]

    in_pad = kparams[0].shape[0]                       # padded input feature dim
    out_pad = kparams[-2].shape[1]                     # padded output feature dim
    if x_flat.shape[1] != in_pad:
        x_flat = jnp.pad(x_flat, ((0, 0), (0, in_pad - x_flat.shape[1])))

    # Batch tiling: 128-row tiles once batch is large, otherwise a single
    # sublane-aligned tile.  Weights stay VMEM-resident (constant index_map).
    tb = 128 if B >= 128 else _round_up(B, SUBLANE)
    b_pad = _round_up(B, tb)
    if b_pad != B:
        x_flat = jnp.pad(x_flat, ((0, b_pad - B), (0, 0)))
    nb = b_pad // tb

    kernel = _m1_kernel if model == "M1" else _m0_kernel

    in_specs = [pl.BlockSpec((tb, in_pad), lambda i: (i, 0))]
    in_specs += [pl.BlockSpec(p.shape, lambda i: (0, 0)) for p in kparams]

    out = pl.pallas_call(
        kernel,
        out_shape=jax.ShapeDtypeStruct((b_pad, out_pad), jnp.float32),
        grid=(nb,),
        in_specs=in_specs,
        out_specs=pl.BlockSpec((tb, out_pad), lambda i: (i, 0)),
        compiler_params=pltpu.CompilerParams(
            dimension_semantics=("parallel",),     # shards batch tiles across TCs on v7x
            vmem_limit_bytes=16 << 20,             # footprint is well under 16 MiB
        ),
    )(x_flat, *kparams)
    return out[:B, :out_features]


# ----------------------------------------------------------------------------
# Pure-JAX references
# ----------------------------------------------------------------------------
def _reference_prepared(x, kparams, model, out_features):
    """Mirrors the kernel math exactly (folded/padded bf16 weights, f32 acc)."""
    B = x.shape[0]
    h = x.reshape(B, -1).astype(jnp.float32)
    in_pad = kparams[0].shape[0]
    h = jnp.pad(h, ((0, 0), (0, in_pad - h.shape[1])))
    ws = [w.astype(jnp.float32) for w in kparams[0::2]]
    bs = list(kparams[1::2])
    if model == "M1":
        for i in range(4):
            h = jnp.maximum(jnp.matmul(h, ws[i], precision=_HI) + bs[i], 0.0)
        h = jnp.matmul(h, ws[4], precision=_HI) + bs[4]
    else:
        h = jnp.matmul(h, ws[0], precision=_HI) + bs[0]
    return h[:, :out_features]


def _reference_f32(x, params, model):
    """Original-module math in full f32 (semantic sanity check)."""
    B = x.shape[0]
    h = x.reshape(B, -1).astype(jnp.float32)
    w0, b0 = params[0], params[1]
    feats = jnp.matmul(h, w0, precision=_HI) + b0
    if model == "M1":
        w1, b1, w2, b2, w3, b3, w4, b4, w5, b5 = params[2:]
        h = jnp.maximum(jnp.matmul(feats, w1, precision=_HI) + b1, 0.0)
        h = jnp.maximum(jnp.matmul(h, w2, precision=_HI) + b2, 0.0)
        h = jnp.maximum(jnp.matmul(h, w3, precision=_HI) + b3, 0.0)
        h = jnp.matmul(h, w4, precision=_HI) + b4
        h = jnp.maximum(h, 0.0)
        return jnp.matmul(h, w5, precision=_HI) + b5
    else:
        wfc, bfc = params[2:]
        return jnp.matmul(feats, wfc, precision=_HI) + bfc  # eval dropout == identity


if __name__ == "__main__":
    key = jax.random.PRNGKey(0)
    kx, kp = jax.random.split(key)

    B, C, H, W = 2, 3, 16, 16
    OUT_FEATURES = 8
    x = jax.random.normal(kx, (B, C, H, W), jnp.float32)
    in_dim = C * H * W

    for model in ("M1", "M0"):
        params = init_params(kp, in_dim, OUT_FEATURES, model=model)
        kparams = fold_and_pad_params(params, in_dim, OUT_FEATURES, model=model)

        out = efficientnet_nn_forward(x, kparams, model=model,
                                      out_features=OUT_FEATURES)
        out = jax.block_until_ready(out)
        assert out.shape == (B, OUT_FEATURES)

        # Tight check vs. a reference doing the exact same (folded, bf16) math.
        ref = _reference_prepared(x, kparams, model, OUT_FEATURES)
        assert jnp.allclose(out, ref, atol=1e-3, rtol=1e-3), f"{model}: kernel mismatch"

        # Loose check vs. the original un-folded f32 semantics
        # (difference is only bf16 weight quantization).
        ref32 = _reference_f32(x, params, model)
        assert jnp.allclose(out, ref32, atol=1e-1, rtol=1e-1), f"{model}: semantics drift"

    print("KERNEL_OK")
</pallas_src>

<mosaic_0001>
module attributes {stable_mosaic.version = 11 : i64} {
  func.func @_m1_kernel(%arg0: i32, %arg1: memref<8x768xf32, #tpu.memory_space<vmem>>, %arg2: memref<768x128xbf16, #tpu.memory_space<vmem>>, %arg3: memref<1x128xf32, #tpu.memory_space<vmem>>, %arg4: memref<128x128xbf16, #tpu.memory_space<vmem>>, %arg5: memref<1x128xf32, #tpu.memory_space<vmem>>, %arg6: memref<128x128xbf16, #tpu.memory_space<vmem>>, %arg7: memref<1x128xf32, #tpu.memory_space<vmem>>, %arg8: memref<128x128xbf16, #tpu.memory_space<vmem>>, %arg9: memref<1x128xf32, #tpu.memory_space<vmem>>, %arg10: memref<128x128xbf16, #tpu.memory_space<vmem>>, %arg11: memref<1x128xf32, #tpu.memory_space<vmem>>, %arg12: memref<8x128xf32, #tpu.memory_space<vmem>>) attributes {dimension_semantics = [#tpu.dimension_semantics<parallel>], iteration_bounds = array<i64: 1>, scalar_prefetch = 0 : i64, scratch_operands = 0 : i64, tpu.core_type = #tpu.core_type<tc>, window_params = [{transform_indices = @transform_0, window_bounds = array<i64: 8, 768>}, {pipeline_mode = #tpu.pipeline_mode<synchronous>, transform_indices = @transform_1, window_bounds = array<i64: 768, 128>}, {pipeline_mode = #tpu.pipeline_mode<synchronous>, transform_indices = @transform_2, window_bounds = array<i64: 1, 128>}, {pipeline_mode = #tpu.pipeline_mode<synchronous>, transform_indices = @transform_3, window_bounds = array<i64: 128, 128>}, {pipeline_mode = #tpu.pipeline_mode<synchronous>, transform_indices = @transform_4, window_bounds = array<i64: 1, 128>}, {pipeline_mode = #tpu.pipeline_mode<synchronous>, transform_indices = @transform_5, window_bounds = array<i64: 128, 128>}, {pipeline_mode = #tpu.pipeline_mode<synchronous>, transform_indices = @transform_6, window_bounds = array<i64: 1, 128>}, {pipeline_mode = #tpu.pipeline_mode<synchronous>, transform_indices = @transform_7, window_bounds = array<i64: 128, 128>}, {pipeline_mode = #tpu.pipeline_mode<synchronous>, transform_indices = @transform_8, window_bounds = array<i64: 1, 128>}, {pipeline_mode = #tpu.pipeline_mode<synchronous>, transform_indices = @transform_9, window_bounds = array<i64: 128, 128>}, {pipeline_mode = #tpu.pipeline_mode<synchronous>, transform_indices = @transform_10, window_bounds = array<i64: 1, 128>}, {transform_indices = @transform_11, window_bounds = array<i64: 8, 128>}]} {
    %c0 = arith.constant 0 : index
    %c0_0 = arith.constant 0 : index
    %0 = vector.load %arg1[%c0, %c0_0] : memref<8x768xf32, #tpu.memory_space<vmem>>, vector<8x768xf32>
    %c0_1 = arith.constant 0 : index
    %c0_2 = arith.constant 0 : index
    %1 = vector.load %arg2[%c0_1, %c0_2] : memref<768x128xbf16, #tpu.memory_space<vmem>>, vector<768x128xbf16>
    %cst = arith.constant dense<0.000000e+00> : vector<8x128xf32>
    %2 = tpu.matmul %0, %1, %cst {dimension_numbers = #tpu.dot_dimension_numbers<[1], [0], [0], [1], [0, 0, 1, 1], [], []>} : vector<8x768xf32>, vector<768x128xbf16>, vector<8x128xf32> -> vector<8x128xf32>
    %c0_3 = arith.constant 0 : index
    %c0_4 = arith.constant 0 : index
    %3 = vector.load %arg3[%c0_3, %c0_4] : memref<1x128xf32, #tpu.memory_space<vmem>>, vector<1x128xf32>
    %4 = vector.broadcast %3 : vector<1x128xf32> to vector<8x128xf32>
    %5 = arith.addf %2, %4 : vector<8x128xf32>
    %cst_5 = arith.constant 0.000000e+00 : f32
    %6 = vector.broadcast %cst_5 : f32 to vector<8x128xf32>
    %7 = arith.maximumf %5, %6 : vector<8x128xf32>
    %c0_6 = arith.constant 0 : index
    %c0_7 = arith.constant 0 : index
    %8 = vector.load %arg4[%c0_6, %c0_7] : memref<128x128xbf16, #tpu.memory_space<vmem>>, vector<128x128xbf16>
    %cst_8 = arith.constant dense<0.000000e+00> : vector<8x128xf32>
    %9 = tpu.matmul %7, %8, %cst_8 {dimension_numbers = #tpu.dot_dimension_numbers<[1], [0], [0], [1], [0, 0, 1, 1], [], []>} : vector<8x128xf32>, vector<128x128xbf16>, vector<8x128xf32> -> vector<8x128xf32>
    %c0_9 = arith.constant 0 : index
    %c0_10 = arith.constant 0 : index
    %10 = vector.load %arg5[%c0_9, %c0_10] : memref<1x128xf32, #tpu.memory_space<vmem>>, vector<1x128xf32>
    %11 = vector.broadcast %10 : vector<1x128xf32> to vector<8x128xf32>
    %12 = arith.addf %9, %11 : vector<8x128xf32>
    %cst_11 = arith.constant 0.000000e+00 : f32
    %13 = vector.broadcast %cst_11 : f32 to vector<8x128xf32>
    %14 = arith.maximumf %12, %13 : vector<8x128xf32>
    %c0_12 = arith.constant 0 : index
    %c0_13 = arith.constant 0 : index
    %15 = vector.load %arg6[%c0_12, %c0_13] : memref<128x128xbf16, #tpu.memory_space<vmem>>, vector<128x128xbf16>
    %cst_14 = arith.constant dense<0.000000e+00> : vector<8x128xf32>
    %16 = tpu.matmul %14, %15, %cst_14 {dimension_numbers = #tpu.dot_dimension_numbers<[1], [0], [0], [1], [0, 0, 1, 1], [], []>} : vector<8x128xf32>, vector<128x128xbf16>, vector<8x128xf32> -> vector<8x128xf32>
    %c0_15 = arith.constant 0 : index
    %c0_16 = arith.constant 0 : index
    %17 = vector.load %arg7[%c0_15, %c0_16] : memref<1x128xf32, #tpu.memory_space<vmem>>, vector<1x128xf32>
    %18 = vector.broadcast %17 : vector<1x128xf32> to vector<8x128xf32>
    %19 = arith.addf %16, %18 : vector<8x128xf32>
    %cst_17 = arith.constant 0.000000e+00 : f32
    %20 = vector.broadcast %cst_17 : f32 to vector<8x128xf32>
    %21 = arith.maximumf %19, %20 : vector<8x128xf32>
    %c0_18 = arith.constant 0 : index
    %c0_19 = arith.constant 0 : index
    %22 = vector.load %arg8[%c0_18, %c0_19] : memref<128x128xbf16, #tpu.memory_space<vmem>>, vector<128x128xbf16>
    %cst_20 = arith.constant dense<0.000000e+00> : vector<8x128xf32>
    %23 = tpu.matmul %21, %22, %cst_20 {dimension_numbers = #tpu.dot_dimension_numbers<[1], [0], [0], [1], [0, 0, 1, 1], [], []>} : vector<8x128xf32>, vector<128x128xbf16>, vector<8x128xf32> -> vector<8x128xf32>
    %c0_21 = arith.constant 0 : index
    %c0_22 = arith.constant 0 : index
    %24 = vector.load %arg9[%c0_21, %c0_22] : memref<1x128xf32, #tpu.memory_space<vmem>>, vector<1x128xf32>
    %25 = vector.broadcast %24 : vector<1x128xf32> to vector<8x128xf32>
    %26 = arith.addf %23, %25 : vector<8x128xf32>
    %cst_23 = arith.constant 0.000000e+00 : f32
    %27 = vector.broadcast %cst_23 : f32 to vector<8x128xf32>
    %28 = arith.maximumf %26, %27 : vector<8x128xf32>
    %c0_24 = arith.constant 0 : index
    %c0_25 = arith.constant 0 : index
    %29 = vector.load %arg10[%c0_24, %c0_25] : memref<128x128xbf16, #tpu.memory_space<vmem>>, vector<128x128xbf16>
    %cst_26 = arith.constant dense<0.000000e+00> : vector<8x128xf32>
    %30 = tpu.matmul %28, %29, %cst_26 {dimension_numbers = #tpu.dot_dimension_numbers<[1], [0], [0], [1], [0, 0, 1, 1], [], []>} : vector<8x128xf32>, vector<128x128xbf16>, vector<8x128xf32> -> vector<8x128xf32>
    %c0_27 = arith.constant 0 : index
    %c0_28 = arith.constant 0 : index
    %31 = vector.load %arg11[%c0_27, %c0_28] : memref<1x128xf32, #tpu.memory_space<vmem>>, vector<1x128xf32>
    %32 = vector.broadcast %31 : vector<1x128xf32> to vector<8x128xf32>
    %33 = arith.addf %30, %32 : vector<8x128xf32>
    %c0_29 = arith.constant 0 : index
    %c0_30 = arith.constant 0 : index
    %34 = vector.load %arg12[%c0_29, %c0_30] : memref<8x128xf32, #tpu.memory_space<vmem>>, vector<8x128xf32>
    tpu.vector_store %arg12[%c0_29, %c0_30], %33 {strides = array<i32>} : memref<8x128xf32, #tpu.memory_space<vmem>>, vector<8x128xf32>,
    return
  }
  func.func @transform_0(%arg0: i32) -> (i32, i32) {
    %c0_i32 = arith.constant 0 : i32
    %c0_i32_0 = arith.constant 0 : i32
    return %arg0, %c0_i32 : i32, i32
  }
  func.func @transform_1(%arg0: i32) -> (i32, i32) {
    %c0_i32 = arith.constant 0 : i32
    %c0_i32_0 = arith.constant 0 : i32
    %c0_i32_1 = arith.constant 0 : i32
    return %c0_i32, %c0_i32_0 : i32, i32
  }
  func.func @transform_2(%arg0: i32) -> (i32, i32) {
    %c0_i32 = arith.constant 0 : i32
    %c0_i32_0 = arith.constant 0 : i32
    %c0_i32_1 = arith.constant 0 : i32
    return %c0_i32, %c0_i32_0 : i32, i32
  }
  func.func @transform_3(%arg0: i32) -> (i32, i32) {
    %c0_i32 = arith.constant 0 : i32
    %c0_i32_0 = arith.constant 0 : i32
    %c0_i32_1 = arith.constant 0 : i32
    return %c0_i32, %c0_i32_0 : i32, i32
  }
  func.func @transform_4(%arg0: i32) -> (i32, i32) {
    %c0_i32 = arith.constant 0 : i32
    %c0_i32_0 = arith.constant 0 : i32
    %c0_i32_1 = arith.constant 0 : i32
    return %c0_i32, %c0_i32_0 : i32, i32
  }
  func.func @transform_5(%arg0: i32) -> (i32, i32) {
    %c0_i32 = arith.constant 0 : i32
    %c0_i32_0 = arith.constant 0 : i32
    %c0_i32_1 = arith.constant 0 : i32
    return %c0_i32, %c0_i32_0 : i32, i32
  }
  func.func @transform_6(%arg0: i32) -> (i32, i32) {
    %c0_i32 = arith.constant 0 : i32
    %c0_i32_0 = arith.constant 0 : i32
    %c0_i32_1 = arith.constant 0 : i32
    return %c0_i32, %c0_i32_0 : i32, i32
  }
  func.func @transform_7(%arg0: i32) -> (i32, i32) {
    %c0_i32 = arith.constant 0 : i32
    %c0_i32_0 = arith.constant 0 : i32
    %c0_i32_1 = arith.constant 0 : i32
    return %c0_i32, %c0_i32_0 : i32, i32
  }
  func.func @transform_8(%arg0: i32) -> (i32, i32) {
    %c0_i32 = arith.constant 0 : i32
    %c0_i32_0 = arith.constant 0 : i32
    %c0_i32_1 = arith.constant 0 : i32
    return %c0_i32, %c0_i32_0 : i32, i32
  }
  func.func @transform_9(%arg0: i32) -> (i32, i32) {
    %c0_i32 = arith.constant 0 : i32
    %c0_i32_0 = arith.constant 0 : i32
    %c0_i32_1 = arith.constant 0 : i32
    return %c0_i32, %c0_i32_0 : i32, i32
  }
  func.func @transform_10(%arg0: i32) -> (i32, i32) {
    %c0_i32 = arith.constant 0 : i32
    %c0_i32_0 = arith.constant 0 : i32
    %c0_i32_1 = arith.constant 0 : i32
    return %c0_i32, %c0_i32_0 : i32, i32
  }
  func.func @transform_11(%arg0: i32) -> (i32, i32) {
    %c0_i32 = arith.constant 0 : i32
    %c0_i32_0 = arith.constant 0 : i32
    return %arg0, %c0_i32 : i32, i32
  }
}

</mosaic_0001>

<llo_original>
// kernel: efficientnet_nn_forward.1
$region0: #{efficientnet_nn_forward.1}
  #allocation0 [shape = 'u32[]', space=smem, size = 0x4, offset = 0x4, fixed_abs, tag = 'smem constant byte address 0x4 - core index']
  #allocation1 [shape = 'u32[144,128]{1,0:T(1,128)}', space=vmem, size = 0x12000, scoped, tag = 'internal scratch']
  %s0 = inlined_call_operand.vmem [shape: f32[8,768], index: 0, kind: input, shape index: {}]
  %s1 = inlined_call_operand.hbm [shape: bf16[768,128], index: 1, kind: input, shape index: {}]
  %s2 = inlined_call_operand.vmem [shape: f32[1,128], index: 2, kind: input, shape index: {}]
  %s3 = inlined_call_operand.vmem [shape: bf16[128,128], index: 3, kind: input, shape index: {}]
  %s4 = inlined_call_operand.vmem [shape: f32[1,128], index: 4, kind: input, shape index: {}]
  %s5 = inlined_call_operand.vmem [shape: bf16[128,128], index: 5, kind: input, shape index: {}]
  %s6 = inlined_call_operand.vmem [shape: f32[1,128], index: 6, kind: input, shape index: {}]
  %s7 = inlined_call_operand.vmem [shape: bf16[128,128], index: 7, kind: input, shape index: {}]
  %s8 = inlined_call_operand.vmem [shape: f32[1,128], index: 8, kind: input, shape index: {}]
  %s9 = inlined_call_operand.hbm [shape: bf16[128,128], index: 9, kind: input, shape index: {}]
  %s10 = inlined_call_operand.vmem [shape: f32[1,128], index: 10, kind: input, shape index: {}]
  %s11 = inlined_call_operand.vmem [shape: f32[8,128], index: 11, kind: output, shape index: {}]
  %s12 = sld [smem:[#allocation0]]
  $region62: #{efficientnet_nn_forward.1} parent=0
    _
  %s14 = ssub.s32 1, %s12
  %s15 = scalar_select 0, %s14, %s12
  $region1: #{efficientnet_nn_forward.1} parent=0
    #allocation2 [shape = 'u8[196608]{0}', space=vmem, size = 0x30000, scoped, tag = 'input window, operand 1, single buffered']
    #allocation3 [shape = 's32[1]{0}', space=sflag, size = 0x4, scoped, tag = 'scoped memory for efficientnet_nn_forward.1']
    #allocation4 [shape = 'u8[32768]{0}', space=vmem, size = 0x8000, scoped, tag = 'input window, operand 9, single buffered']
    #allocation5 [shape = 's32[1]{0}', space=sflag, size = 0x4, scoped, tag = 'scoped memory for efficientnet_nn_forward.1']
    %16 = vsyncpa [#allocation3], 0
    %17 = vsyncpa [#allocation5], 0
    // Predicated region
    $region2: #{efficientnet_nn_forward.1} parent=1 // pred_check
      _
    $region3: #{efficientnet_nn_forward.1} parent=1 // pred_check_branch
      %19 = sbr.rel (0) target = $region5
    $region4: #{efficientnet_nn_forward.1} parent=1 // pred_region
      _
    $region5: #{efficientnet_nn_forward.1} parent=1 // pred_fallthru
      _
    // Predicated region
    $region6: #{efficientnet_nn_forward.1} parent=1 // pred_check
      _
    $region7: #{efficientnet_nn_forward.1} parent=1 // pred_check_branch
      %21 = sbr.rel (0) target = $region9
    $region8: #{efficientnet_nn_forward.1} parent=1 // pred_region
      %s23 = ssub.s32 6144, 6144
      %24 = vsyncadd [#allocation3], %s23
      %s25 = sshll.u32 [#allocation2], 4
      %s26 = int_to_ptr.vmem [resolvable:$true] %s25
      %31 = dma.hbm_to_vmem [thread:$0]  %s1, 6144, %s26, [#allocation3], 64, 64, 4
    $region9: #{efficientnet_nn_forward.1} parent=1 // pred_fallthru
      _
    // Predicated region
    $region10: #{efficientnet_nn_forward.1} parent=1 // pred_check
      _
    $region11: #{efficientnet_nn_forward.1} parent=1 // pred_check_branch
      %33 = sbr.rel (0) target = $region13
    $region12: #{efficientnet_nn_forward.1} parent=1 // pred_region
      _
    $region13: #{efficientnet_nn_forward.1} parent=1 // pred_fallthru
      _
    // Predicated region
    $region14: #{efficientnet_nn_forward.1} parent=1 // pred_check
      _
    $region15: #{efficientnet_nn_forward.1} parent=1 // pred_check_branch
      %35 = sbr.rel (0) target = $region17
    $region16: #{efficientnet_nn_forward.1} parent=1 // pred_region
      _
    $region17: #{efficientnet_nn_forward.1} parent=1 // pred_fallthru
      _
    // Predicated region
    $region18: #{efficientnet_nn_forward.1} parent=1 // pred_check
      _
    $region19: #{efficientnet_nn_forward.1} parent=1 // pred_check_branch
      %37 = sbr.rel (0) target = $region21
    $region20: #{efficientnet_nn_forward.1} parent=1 // pred_region
      _
    $region21: #{efficientnet_nn_forward.1} parent=1 // pred_fallthru
      _
    // Predicated region
    $region22: #{efficientnet_nn_forward.1} parent=1 // pred_check
      _
    $region23: #{efficientnet_nn_forward.1} parent=1 // pred_check_branch
      %39 = sbr.rel (0) target = $region25
    $region24: #{efficientnet_nn_forward.1} parent=1 // pred_region
      _
    $region25: #{efficientnet_nn_forward.1} parent=1 // pred_fallthru
      _
    // Predicated region
    $region26: #{efficientnet_nn_forward.1} parent=1 // pred_check
      _
    $region27: #{efficientnet_nn_forward.1} parent=1 // pred_check_branch
      %41 = sbr.rel (0) target = $region29
    $region28: #{efficientnet_nn_forward.1} parent=1 // pred_region
      _
    $region29: #{efficientnet_nn_forward.1} parent=1 // pred_fallthru
      _
    // Predicated region
    $region30: #{efficientnet_nn_forward.1} parent=1 // pred_check
      _
    $region31: #{efficientnet_nn_forward.1} parent=1 // pred_check_branch
      %43 = sbr.rel (0) target = $region33
    $region32: #{efficientnet_nn_forward.1} parent=1 // pred_region
      _
    $region33: #{efficientnet_nn_forward.1} parent=1 // pred_fallthru
      _
    // Predicated region
    $region34: #{efficientnet_nn_forward.1} parent=1 // pred_check
      _
    $region35: #{efficientnet_nn_forward.1} parent=1 // pred_check_branch
      %45 = sbr.rel (0) target = $region37
    $region36: #{efficientnet_nn_forward.1} parent=1 // pred_region
      _
    $region37: #{efficientnet_nn_forward.1} parent=1 // pred_fallthru
      _
    // Predicated region
    $region38: #{efficientnet_nn_forward.1} parent=1 // pred_check
      _
    $region39: #{efficientnet_nn_forward.1} parent=1 // pred_check_branch
      %47 = sbr.rel (0) target = $region41
    $region40: #{efficientnet_nn_forward.1} parent=1 // pred_region
      %s49 = ssub.s32 1024, 1024
      %50 = vsyncadd [#allocation5], %s49
      %s51 = sshll.u32 [#allocation4], 4
      %s52 = int_to_ptr.vmem [resolvable:$true] %s51
      %57 = dma.hbm_to_vmem [thread:$0]  %s9, 1024, %s52, [#allocation5], 64, 64, 4
    $region41: #{efficientnet_nn_forward.1} parent=1 // pred_fallthru
      _
    // Predicated region
    $region42: #{efficientnet_nn_forward.1} parent=1 // pred_check
      _
    $region43: #{efficientnet_nn_forward.1} parent=1 // pred_check_branch
      %59 = sbr.rel (0) target = $region45
    $region44: #{efficientnet_nn_forward.1} parent=1 // pred_region
      _
    $region45: #{efficientnet_nn_forward.1} parent=1 // pred_fallthru
      _
    // Predicated region
    $region46: #{efficientnet_nn_forward.1} parent=1 // pred_check
      _
    $region47: #{efficientnet_nn_forward.1} parent=1 // pred_check_branch
      %61 = sbr.rel (0) target = $region49
    $region48: #{efficientnet_nn_forward.1} parent=1 // pred_region
      %62 = dma.done [#allocation3], 6144
    $region49: #{efficientnet_nn_forward.1} parent=1 // pred_fallthru
      _
    // Predicated region
    $region50: #{efficientnet_nn_forward.1} parent=1 // pred_check
      _
    $region51: #{efficientnet_nn_forward.1} parent=1 // pred_check_branch
      %64 = sbr.rel (0) target = $region53
    $region52: #{efficientnet_nn_forward.1} parent=1 // pred_region
      %65 = dma.done [#allocation5], 1024
    $region53: #{efficientnet_nn_forward.1} parent=1 // pred_fallthru
      _
    %v67 = vld [vmem:[%s0] sm:$0xff]
    %v68 = vld [vmem:[%s0 + $0x8] sm:$0xff]
    %v69 = vld [vmem:[%s0 + $0x10] sm:$0xff]
    %v70 = vld [vmem:[%s0 + $0x18] sm:$0xff]
    %v71 = vld [vmem:[%s0 + $0x20] sm:$0xff]
    %v72 = vld [vmem:[%s0 + $0x28] sm:$0xff]
    %v73 = vld [vmem:[#allocation2] sm:$0xf]
    %v74 = vld [vmem:[#allocation2 + $0x4] sm:$0xf]
    %v75 = vld [vmem:[#allocation2 + $0x8] sm:$0xf]
    %v76 = vld [vmem:[#allocation2 + $0xc] sm:$0xf]
    %v77 = vld [vmem:[#allocation2 + $0x10] sm:$0xf]
    %v78 = vld [vmem:[#allocation2 + $0x14] sm:$0xf]
    %v79 = vld [vmem:[#allocation2 + $0x18] sm:$0xf]
    %v80 = vld [vmem:[#allocation2 + $0x1c] sm:$0xf]
    %v81 = vld [vmem:[#allocation2 + $0x20] sm:$0xf]
    %v82 = vld [vmem:[#allocation2 + $0x24] sm:$0xf]
    %v83 = vld [vmem:[#allocation2 + $0x28] sm:$0xf]
    %v84 = vld [vmem:[#allocation2 + $0x2c] sm:$0xf]
    %v85 = vld [vmem:[#allocation2 + $0x30] sm:$0xf]
    %v86 = vld [vmem:[#allocation2 + $0x34] sm:$0xf]
    %v87 = vld [vmem:[#allocation2 + $0x38] sm:$0xf]
    %v88 = vld [vmem:[#allocation2 + $0x3c] sm:$0xf]
    %v89 = vld [vmem:[#allocation2 + $0x40] sm:$0xf]
    %v90 = vld [vmem:[#allocation2 + $0x44] sm:$0xf]
    %v91 = vld [vmem:[#allocation2 + $0x48] sm:$0xf]
    %v92 = vld [vmem:[#allocation2 + $0x4c] sm:$0xf]
    %v93 = vld [vmem:[#allocation2 + $0x50] sm:$0xf]
    %v94 = vld [vmem:[#allocation2 + $0x54] sm:$0xf]
    %v95 = vld [vmem:[#allocation2 + $0x58] sm:$0xf]
    %v96 = vld [vmem:[#allocation2 + $0x5c] sm:$0xf]
    %v97 = vld [vmem:[#allocation2 + $0x60] sm:$0xf]
    %v98 = vld [vmem:[#allocation2 + $0x64] sm:$0xf]
    %v99 = vld [vmem:[#allocation2 + $0x68] sm:$0xf]
    %v100 = vld [vmem:[#allocation2 + $0x6c] sm:$0xf]
    %v101 = vld [vmem:[#allocation2 + $0x70] sm:$0xf]
    %v102 = vld [vmem:[#allocation2 + $0x74] sm:$0xf]
    %v103 = vld [vmem:[#allocation2 + $0x78] sm:$0xf]
    %v104 = vld [vmem:[#allocation2 + $0x7c] sm:$0xf]
    %v105 = vld [vmem:[#allocation2 + $0x80] sm:$0xf]
    %v106 = vld [vmem:[#allocation2 + $0x84] sm:$0xf]
    %v107 = vld [vmem:[#allocation2 + $0x88] sm:$0xf]
    %v108 = vld [vmem:[#allocation2 + $0x8c] sm:$0xf]
    %v109 = vld [vmem:[#allocation2 + $0x90] sm:$0xf]
    %v110 = vld [vmem:[#allocation2 + $0x94] sm:$0xf]
    %v111 = vld [vmem:[#allocation2 + $0x98] sm:$0xf]
    %v112 = vld [vmem:[#allocation2 + $0x9c] sm:$0xf]
    %v113 = vld [vmem:[#allocation2 + $0xa0] sm:$0xf]
    %v114 = vld [vmem:[#allocation2 + $0xa4] sm:$0xf]
    %v115 = vld [vmem:[#allocation2 + $0xa8] sm:$0xf]
    %v116 = vld [vmem:[#allocation2 + $0xac] sm:$0xf]
    %v117 = vld [vmem:[#allocation2 + $0xb0] sm:$0xf]
    %v118 = vld [vmem:[#allocation2 + $0xb4] sm:$0xf]
    %v119 = vld [vmem:[#allocation2 + $0xb8] sm:$0xf]
    %v120 = vld [vmem:[#allocation2 + $0xbc] sm:$0xf]
    %v121 = vld [vmem:[#allocation2 + $0xc0] sm:$0xf]
    %v122 = vld [vmem:[#allocation2 + $0xc4] sm:$0xf]
    %v123 = vld [vmem:[#allocation2 + $0xc8] sm:$0xf]
    %v124 = vld [vmem:[#allocation2 + $0xcc] sm:$0xf]
    %v125 = vld [vmem:[#allocation2 + $0xd0] sm:$0xf]
    %v126 = vld [vmem:[#allocation2 + $0xd4] sm:$0xf]
    %v127 = vld [vmem:[#allocation2 + $0xd8] sm:$0xf]
    %v128 = vld [vmem:[#allocation2 + $0xdc] sm:$0xf]
    %v129 = vld [vmem:[#allocation2 + $0xe0] sm:$0xf]
    %v130 = vld [vmem:[#allocation2 + $0xe4] sm:$0xf]
    %v131 = vld [vmem:[#allocation2 + $0xe8] sm:$0xf]
    %v132 = vld [vmem:[#allocation2 + $0xec] sm:$0xf]
    %v133 = vld [vmem:[#allocation2 + $0xf0] sm:$0xf]
    %v134 = vld [vmem:[#allocation2 + $0xf4] sm:$0xf]
    %v135 = vld [vmem:[#allocation2 + $0xf8] sm:$0xf]
    %v136 = vld [vmem:[#allocation2 + $0xfc] sm:$0xf]
    %v137 = vld [vmem:[#allocation2 + $0x100] sm:$0xf]
    %v138 = vld [vmem:[#allocation2 + $0x104] sm:$0xf]
    %v139 = vld [vmem:[#allocation2 + $0x108] sm:$0xf]
    %v140 = vld [vmem:[#allocation2 + $0x10c] sm:$0xf]
    %v141 = vld [vmem:[#allocation2 + $0x110] sm:$0xf]
    %v142 = vld [vmem:[#allocation2 + $0x114] sm:$0xf]
    %v143 = vld [vmem:[#allocation2 + $0x118] sm:$0xf]
    %v144 = vld [vmem:[#allocation2 + $0x11c] sm:$0xf]
    %v145 = vld [vmem:[#allocation2 + $0x120] sm:$0xf]
    %v146 = vld [vmem:[#allocation2 + $0x124] sm:$0xf]
    %v147 = vld [vmem:[#allocation2 + $0x128] sm:$0xf]
    %v148 = vld [vmem:[#allocation2 + $0x12c] sm:$0xf]
    %v149 = vld [vmem:[#allocation2 + $0x130] sm:$0xf]
    %v150 = vld [vmem:[#allocation2 + $0x134] sm:$0xf]
    %v151 = vld [vmem:[#allocation2 + $0x138] sm:$0xf]
    %v152 = vld [vmem:[#allocation2 + $0x13c] sm:$0xf]
    %v153 = vld [vmem:[#allocation2 + $0x140] sm:$0xf]
    %v154 = vld [vmem:[#allocation2 + $0x144] sm:$0xf]
    %v155 = vld [vmem:[#allocation2 + $0x148] sm:$0xf]
    %v156 = vld [vmem:[#allocation2 + $0x14c] sm:$0xf]
    %v157 = vld [vmem:[#allocation2 + $0x150] sm:$0xf]
    %v158 = vld [vmem:[#allocation2 + $0x154] sm:$0xf]
    %v159 = vld [vmem:[#allocation2 + $0x158] sm:$0xf]
    %v160 = vld [vmem:[#allocation2 + $0x15c] sm:$0xf]
    %v161 = vld [vmem:[#allocation2 + $0x160] sm:$0xf]
    %v162 = vld [vmem:[#allocation2 + $0x164] sm:$0xf]
    %v163 = vld [vmem:[#allocation2 + $0x168] sm:$0xf]
    %v164 = vld [vmem:[#allocation2 + $0x16c] sm:$0xf]
    %v165 = vld [vmem:[#allocation2 + $0x170] sm:$0xf]
    %v166 = vld [vmem:[#allocation2 + $0x174] sm:$0xf]
    %v167 = vld [vmem:[#allocation2 + $0x178] sm:$0xf]
    %v168 = vld [vmem:[#allocation2 + $0x17c] sm:$0xf]
    %v169 = vld [vmem:[%s2] sm:$0x1]
    %v171 = vlaneseq
    %v172 = vshrl.u32 %v171, 7
    %v173 = vsub.s32 0, %v172
    %v174 = vrot.slane %v169, %v173
    %v272 = vunpack.c.l.b16 %v73
    %v273 = vunpack.c.l.b16 %v74
    %v274 = vunpack.c.l.b16 %v75
    %v275 = vunpack.c.l.b16 %v76
    %v276 = vunpack.c.l.b16 %v77
    %v277 = vunpack.c.l.b16 %v78
    %v278 = vunpack.c.l.b16 %v79
    %v279 = vunpack.c.l.b16 %v80
    %v280 = vunpack.c.l.b16 %v81
    %v281 = vunpack.c.l.b16 %v82
    %v282 = vunpack.c.l.b16 %v83
    %v283 = vunpack.c.l.b16 %v84
    %v284 = vunpack.c.l.b16 %v85
    %v285 = vunpack.c.l.b16 %v86
    %v286 = vunpack.c.l.b16 %v87
    %v287 = vunpack.c.l.b16 %v88
    %v288 = vunpack.c.l.b16 %v89
    %v289 = vunpack.c.l.b16 %v90
    %v290 = vunpack.c.l.b16 %v91
    %v291 = vunpack.c.l.b16 %v92
    %v292 = vunpack.c.l.b16 %v93
    %v293 = vunpack.c.l.b16 %v94
    %v294 = vunpack.c.l.b16 %v95
    %v295 = vunpack.c.l.b16 %v96
    %v296 = vunpack.c.l.b16 %v97
    %v297 = vunpack.c.l.b16 %v98
    %v298 = vunpack.c.l.b16 %v99
    %v299 = vunpack.c.l.b16 %v100
    %v300 = vunpack.c.l.b16 %v101
    %v301 = vunpack.c.l.b16 %v102
    %v302 = vunpack.c.l.b16 %v103
    %v303 = vunpack.c.l.b16 %v104
    %v304 = vunpack.c.l.b16 %v105
    %v305 = vunpack.c.l.b16 %v106
    %v306 = vunpack.c.l.b16 %v107
    %v307 = vunpack.c.l.b16 %v108
    %v308 = vunpack.c.l.b16 %v109
    %v309 = vunpack.c.l.b16 %v110
    %v310 = vunpack.c.l.b16 %v111
    %v311 = vunpack.c.l.b16 %v112
    %v312 = vunpack.c.l.b16 %v113
    %v313 = vunpack.c.l.b16 %v114
    %v314 = vunpack.c.l.b16 %v115
    %v315 = vunpack.c.l.b16 %v116
    %v316 = vunpack.c.l.b16 %v117
    %v317 = vunpack.c.l.b16 %v118
    %v318 = vunpack.c.l.b16 %v119
    %v319 = vunpack.c.l.b16 %v120
    %v320 = vunpack.c.l.b16 %v121
    %v321 = vunpack.c.l.b16 %v122
    %v322 = vunpack.c.l.b16 %v123
    %v323 = vunpack.c.l.b16 %v124
    %v324 = vunpack.c.l.b16 %v125
    %v325 = vunpack.c.l.b16 %v126
    %v326 = vunpack.c.l.b16 %v127
    %v327 = vunpack.c.l.b16 %v128
    %v328 = vunpack.c.l.b16 %v129
    %v329 = vunpack.c.l.b16 %v130
    %v330 = vunpack.c.l.b16 %v131
    %v331 = vunpack.c.l.b16 %v132
    %v332 = vunpack.c.l.b16 %v133
    %v333 = vunpack.c.l.b16 %v134
    %v334 = vunpack.c.l.b16 %v135
    %v335 = vunpack.c.l.b16 %v136
    %v336 = vunpack.c.l.b16 %v137
    %v337 = vunpack.c.l.b16 %v138
    %v338 = vunpack.c.l.b16 %v139
    %v339 = vunpack.c.l.b16 %v140
    %v340 = vunpack.c.l.b16 %v141
    %v341 = vunpack.c.l.b16 %v142
    %v342 = vunpack.c.l.b16 %v143
    %v343 = vunpack.c.l.b16 %v144
    %v344 = vunpack.c.l.b16 %v145
    %v345 = vunpack.c.l.b16 %v146
    %v346 = vunpack.c.l.b16 %v147
    %v347 = vunpack.c.l.b16 %v148
    %v348 = vunpack.c.l.b16 %v149
    %v349 = vunpack.c.l.b16 %v150
    %v350 = vunpack.c.l.b16 %v151
    %v351 = vunpack.c.l.b16 %v152
    %v352 = vunpack.c.l.b16 %v153
    %v353 = vunpack.c.l.b16 %v154
    %v354 = vunpack.c.l.b16 %v155
    %v355 = vunpack.c.l.b16 %v156
    %v356 = vunpack.c.l.b16 %v157
    %v357 = vunpack.c.l.b16 %v158
    %v358 = vunpack.c.l.b16 %v159
    %v359 = vunpack.c.l.b16 %v160
    %v360 = vunpack.c.l.b16 %v161
    %v361 = vunpack.c.l.b16 %v162
    %v362 = vunpack.c.l.b16 %v163
    %v363 = vunpack.c.l.b16 %v164
    %v364 = vunpack.c.l.b16 %v165
    %v365 = vunpack.c.l.b16 %v166
    %v366 = vunpack.c.l.b16 %v167
    %v367 = vunpack.c.l.b16 %v168
    %v368 = vpack.c.b16 %v273, %v272
    %v369 = vpack.c.b16 %v275, %v274
    %v370 = vpack.c.b16 %v277, %v276
    %v371 = vpack.c.b16 %v279, %v278
    %v372 = vpack.c.b16 %v281, %v280
    %v373 = vpack.c.b16 %v283, %v282
    %v374 = vpack.c.b16 %v285, %v284
    %v375 = vpack.c.b16 %v287, %v286
    %v376 = vpack.c.b16 %v289, %v288
    %v377 = vpack.c.b16 %v291, %v290
    %v378 = vpack.c.b16 %v293, %v292
    %v379 = vpack.c.b16 %v295, %v294
    %v380 = vpack.c.b16 %v297, %v296
    %v381 = vpack.c.b16 %v299, %v298
    %v382 = vpack.c.b16 %v301, %v300
    %v383 = vpack.c.b16 %v303, %v302
    %v384 = vpack.c.b16 %v305, %v304
    %v385 = vpack.c.b16 %v307, %v306
    %v386 = vpack.c.b16 %v309, %v308
    %v387 = vpack.c.b16 %v311, %v310
    %v388 = vpack.c.b16 %v313, %v312
    %v389 = vpack.c.b16 %v315, %v314
    %v390 = vpack.c.b16 %v317, %v316
    %v391 = vpack.c.b16 %v319, %v318
    %v392 = vpack.c.b16 %v321, %v320
    %v393 = vpack.c.b16 %v323, %v322
    %v394 = vpack.c.b16 %v325, %v324
    %v395 = vpack.c.b16 %v327, %v326
    %v396 = vpack.c.b16 %v329, %v328
    %v397 = vpack.c.b16 %v331, %v330
    %v398 = vpack.c.b16 %v333, %v332
    %v399 = vpack.c.b16 %v335, %v334
    %v400 = vpack.c.b16 %v337, %v336
    %v401 = vpack.c.b16 %v339, %v338
    %v402 = vpack.c.b16 %v341, %v340
    %v403 = vpack.c.b16 %v343, %v342
    %v404 = vpack.c.b16 %v345, %v344
    %v405 = vpack.c.b16 %v347, %v346
    %v406 = vpack.c.b16 %v349, %v348
    %v407 = vpack.c.b16 %v351, %v350
    %v408 = vpack.c.b16 %v353, %v352
    %v409 = vpack.c.b16 %v355, %v354
    %v410 = vpack.c.b16 %v357, %v356
    %v411 = vpack.c.b16 %v359, %v358
    %v412 = vpack.c.b16 %v361, %v360
    %v413 = vpack.c.b16 %v363, %v362
    %v414 = vpack.c.b16 %v365, %v364
    %v415 = vpack.c.b16 %v367, %v366
    %464 = vmatprep.subr.bf16.mxu0 0
    %465 = vmatpush1.bf16.msra.mxu0 %v368
    %466 = vmatprep.subr.bf16.mxu0 0
    %467 = vmatpush1.bf16.msra.mxu0 %v369
    %468 = vmatprep.subr.bf16.mxu0 0
    %469 = vmatpush1.bf16.msra.mxu0 %v370
    %470 = vmatprep.subr.bf16.mxu0 0
    %471 = vmatpush1.bf16.msra.mxu0 %v371
    %472 = vmatprep.subr.bf16.mxu0 0
    %473 = vmatpush1.bf16.msra.mxu0 %v372
    %474 = vmatprep.subr.bf16.mxu0 0
    %475 = vmatpush1.bf16.msra.mxu0 %v373
    %476 = vmatprep.subr.bf16.mxu0 0
    %477 = vmatpush1.bf16.msra.mxu0 %v374
    %478 = vmatprep.subr.bf16.mxu0 0
    %479 = vmatpush1.bf16.msra.mxu0 %v375
    %480 = vmatprep.subr.bf16.mxu0 0
    %481 = vmatpush1.bf16.msra.mxu0 %v376
    %482 = vmatprep.subr.bf16.mxu0 0
    %483 = vmatpush1.bf16.msra.mxu0 %v377
    %484 = vmatprep.subr.bf16.mxu0 0
    %485 = vmatpush1.bf16.msra.mxu0 %v378
    %486 = vmatprep.subr.bf16.mxu0 0
    %487 = vmatpush1.bf16.msra.mxu0 %v379
    %488 = vmatprep.subr.bf16.mxu0 0
    %489 = vmatpush1.bf16.msra.mxu0 %v380
    %490 = vmatprep.subr.bf16.mxu0 0
    %491 = vmatpush1.bf16.msra.mxu0 %v381
    %492 = vmatprep.subr.bf16.mxu0 0
    %493 = vmatpush1.bf16.msra.mxu0 %v382
    %494 = vmatprep.subr.bf16.mxu0 0
    %495 = vmatpush1.bf16.msra.mxu0 %v383
    %496 = vmatprep.mubr.f32.mxu0 %v68
    %497 = vmatmul.mubr.f32.gmra.mrb[0].mxu0 %v67
    %v498 = vpop.f32.mrb[0].mxu0
    %v499 = vadd.f32 %v174, %v498
    %v500 = vpop.f32.mrb[0].mxu0
    %501 = vdwg.mxu0
    %502 = vmatprep.subr.bf16.mxu0 0
    %503 = vmatpush1.bf16.msra.mxu0 %v384
    %504 = vmatprep.subr.bf16.mxu0 0
    %505 = vmatpush1.bf16.msra.mxu0 %v385
    %506 = vmatprep.subr.bf16.mxu0 0
    %507 = vmatpush1.bf16.msra.mxu0 %v386
    %508 = vmatprep.subr.bf16.mxu0 0
    %509 = vmatpush1.bf16.msra.mxu0 %v387
    %510 = vmatprep.subr.bf16.mxu0 0
    %511 = vmatpush1.bf16.msra.mxu0 %v388
    %512 = vmatprep.subr.bf16.mxu0 0
    %513 = vmatpush1.bf16.msra.mxu0 %v389
    %514 = vmatprep.subr.bf16.mxu0 0
    %515 = vmatpush1.bf16.msra.mxu0 %v390
    %516 = vmatprep.subr.bf16.mxu0 0
    %517 = vmatpush1.bf16.msra.mxu0 %v391
    %518 = vmatprep.subr.bf16.mxu0 0
    %519 = vmatpush1.bf16.msra.mxu0 %v392
    %520 = vmatprep.subr.bf16.mxu0 0
    %521 = vmatpush1.bf16.msra.mxu0 %v393
    %522 = vmatprep.subr.bf16.mxu0 0
    %523 = vmatpush1.bf16.msra.mxu0 %v394
    %524 = vmatprep.subr.bf16.mxu0 0
    %525 = vmatpush1.bf16.msra.mxu0 %v395
    %526 = vmatprep.subr.bf16.mxu0 0
    %527 = vmatpush1.bf16.msra.mxu0 %v396
    %528 = vmatprep.subr.bf16.mxu0 0
    %529 = vmatpush1.bf16.msra.mxu0 %v397
    %530 = vmatprep.subr.bf16.mxu0 0
    %531 = vmatpush1.bf16.msra.mxu0 %v398
    %532 = vmatprep.subr.bf16.mxu0 0
    %533 = vmatpush1.bf16.msra.mxu0 %v399
    %534 = vmatprep.mubr.f32.mxu0 %v70
    %535 = vmatmul.mubr.f32.gmra.mrb[0].mxu0 %v69
    %v536 = vpop.f32.mrb[0].mxu0
    %v537 = vadd.f32 %v499, %v536
    %v538 = vpop.f32.mrb[0].mxu0
    %539 = vdwg.mxu0
    %540 = vmatprep.subr.bf16.mxu0 0
    %541 = vmatpush1.bf16.msra.mxu0 %v400
    %542 = vmatprep.subr.bf16.mxu0 0
    %543 = vmatpush1.bf16.msra.mxu0 %v401
    %544 = vmatprep.subr.bf16.mxu0 0
    %545 = vmatpush1.bf16.msra.mxu0 %v402
    %546 = vmatprep.subr.bf16.mxu0 0
    %547 = vmatpush1.bf16.msra.mxu0 %v403
    %548 = vmatprep.subr.bf16.mxu0 0
    %549 = vmatpush1.bf16.msra.mxu0 %v404
    %550 = vmatprep.subr.bf16.mxu0 0
    %551 = vmatpush1.bf16.msra.mxu0 %v405
    %552 = vmatprep.subr.bf16.mxu0 0
    %553 = vmatpush1.bf16.msra.mxu0 %v406
    %554 = vmatprep.subr.bf16.mxu0 0
    %555 = vmatpush1.bf16.msra.mxu0 %v407
    %556 = vmatprep.subr.bf16.mxu0 0
    %557 = vmatpush1.bf16.msra.mxu0 %v408
    %558 = vmatprep.subr.bf16.mxu0 0
    %559 = vmatpush1.bf16.msra.mxu0 %v409
    %560 = vmatprep.subr.bf16.mxu0 0
    %561 = vmatpush1.bf16.msra.mxu0 %v410
    %562 = vmatprep.subr.bf16.mxu0 0
    %563 = vmatpush1.bf16.msra.mxu0 %v411
    %564 = vmatprep.subr.bf16.mxu0 0
    %565 = vmatpush1.bf16.msra.mxu0 %v412
    %566 = vmatprep.subr.bf16.mxu0 0
    %567 = vmatpush1.bf16.msra.mxu0 %v413
    %568 = vmatprep.subr.bf16.mxu0 0
    %569 = vmatpush1.bf16.msra.mxu0 %v414
    %570 = vmatprep.subr.bf16.mxu0 0
    %571 = vmatpush1.bf16.msra.mxu0 %v415
    %572 = vmatprep.mubr.f32.mxu0 %v72
    %573 = vmatmul.mubr.f32.gmra.mrb[0].mxu0 %v71
    %v574 = vpop.f32.mrb[0].mxu0
    %v575 = vadd.f32 %v537, %v574
    %v576 = vpop.f32.mrb[0].mxu0
    %577 = vdwg.mxu0
    %v578 = vmax.f32 %v575, 0.0
    %v579 = vld [vmem:[%s3] sm:$0xf]
    %v580 = vld [vmem:[%s3 + $0x4] sm:$0xf]
    %v581 = vld [vmem:[%s3 + $0x8] sm:$0xf]
    %v582 = vld [vmem:[%s3 + $0xc] sm:$0xf]
    %v583 = vld [vmem:[%s3 + $0x10] sm:$0xf]
    %v584 = vld [vmem:[%s3 + $0x14] sm:$0xf]
    %v585 = vld [vmem:[%s3 + $0x18] sm:$0xf]
    %v586 = vld [vmem:[%s3 + $0x1c] sm:$0xf]
    %v587 = vld [vmem:[%s3 + $0x20] sm:$0xf]
    %v588 = vld [vmem:[%s3 + $0x24] sm:$0xf]
    %v589 = vld [vmem:[%s3 + $0x28] sm:$0xf]
    %v590 = vld [vmem:[%s3 + $0x2c] sm:$0xf]
    %v591 = vld [vmem:[%s3 + $0x30] sm:$0xf]
    %v592 = vld [vmem:[%s3 + $0x34] sm:$0xf]
    %v593 = vld [vmem:[%s3 + $0x38] sm:$0xf]
    %v594 = vld [vmem:[%s3 + $0x3c] sm:$0xf]
    %v595 = vld [vmem:[%s4] sm:$0x1]
    %v597 = vlaneseq
    %v598 = vshrl.u32 %v597, 7
    %v599 = vsub.s32 0, %v598
    %v600 = vrot.slane %v595, %v599
    %v618 = vunpack.c.l.b16 %v579
    %v619 = vunpack.c.l.b16 %v580
    %v620 = vunpack.c.l.b16 %v581
    %v621 = vunpack.c.l.b16 %v582
    %v622 = vunpack.c.l.b16 %v583
    %v623 = vunpack.c.l.b16 %v584
    %v624 = vunpack.c.l.b16 %v585
    %v625 = vunpack.c.l.b16 %v586
    %v626 = vunpack.c.l.b16 %v587
    %v627 = vunpack.c.l.b16 %v588
    %v628 = vunpack.c.l.b16 %v589
    %v629 = vunpack.c.l.b16 %v590
    %v630 = vunpack.c.l.b16 %v591
    %v631 = vunpack.c.l.b16 %v592
    %v632 = vunpack.c.l.b16 %v593
    %v633 = vunpack.c.l.b16 %v594
    %v634 = vpack.c.b16 %v619, %v618
    %v635 = vpack.c.b16 %v621, %v620
    %v636 = vpack.c.b16 %v623, %v622
    %v637 = vpack.c.b16 %v625, %v624
    %v638 = vpack.c.b16 %v627, %v626
    %v639 = vpack.c.b16 %v629, %v628
    %v640 = vpack.c.b16 %v631, %v630
    %v641 = vpack.c.b16 %v633, %v632
    %650 = vmatprep.subr.bf16.mxu0 0
    %651 = vmatpush1.bf16.msra.mxu0 %v634
    %652 = vmatprep.subr.bf16.mxu0 0
    %653 = vmatpush1.bf16.msra.mxu0 %v635
    %654 = vmatprep.subr.bf16.mxu0 0
    %655 = vmatpush1.bf16.msra.mxu0 %v636
    %656 = vmatprep.subr.bf16.mxu0 0
    %657 = vmatpush1.bf16.msra.mxu0 %v637
    %658 = vmatprep.subr.bf16.mxu0 0
    %659 = vmatpush1.bf16.msra.mxu0 %v638
    %660 = vmatprep.subr.bf16.mxu0 0
    %661 = vmatpush1.bf16.msra.mxu0 %v639
    %662 = vmatprep.subr.bf16.mxu0 0
    %663 = vmatpush1.bf16.msra.mxu0 %v640
    %664 = vmatprep.subr.bf16.mxu0 0
    %665 = vmatpush1.bf16.msra.mxu0 %v641
    %666 = vmatprep.subr.bf16.mxu0 0
    %667 = vmatpush1.bf16.msra.mxu0 0
    %668 = vmatprep.subr.bf16.mxu0 0
    %669 = vmatpush1.bf16.msra.mxu0 0
    %670 = vmatprep.subr.bf16.mxu0 0
    %671 = vmatpush1.bf16.msra.mxu0 0
    %672 = vmatprep.subr.bf16.mxu0 0
    %673 = vmatpush1.bf16.msra.mxu0 0
    %674 = vmatprep.subr.bf16.mxu0 0
    %675 = vmatpush1.bf16.msra.mxu0 0
    %676 = vmatprep.subr.bf16.mxu0 0
    %677 = vmatpush1.bf16.msra.mxu0 0
    %678 = vmatprep.subr.bf16.mxu0 0
    %679 = vmatpush1.bf16.msra.mxu0 0
    %680 = vmatprep.subr.bf16.mxu0 0
    %681 = vmatpush1.bf16.msra.mxu0 0
    %682 = vmatprep.mubr.f32.mxu0 0.0
    %683 = vmatmul.mubr.f32.gmra.mrb[0].mxu0 %v578
    %v684 = vpop.f32.mrb[0].mxu0
    %v685 = vadd.f32 %v600, %v684
    %v686 = vpop.f32.mrb[0].mxu0
    %687 = vdwg.mxu0
    %v688 = vmax.f32 %v685, 0.0
    %v689 = vld [vmem:[%s5] sm:$0xf]
    %v690 = vld [vmem:[%s5 + $0x4] sm:$0xf]
    %v691 = vld [vmem:[%s5 + $0x8] sm:$0xf]
    %v692 = vld [vmem:[%s5 + $0xc] sm:$0xf]
    %v693 = vld [vmem:[%s5 + $0x10] sm:$0xf]
    %v694 = vld [vmem:[%s5 + $0x14] sm:$0xf]
    %v695 = vld [vmem:[%s5 + $0x18] sm:$0xf]
    %v696 = vld [vmem:[%s5 + $0x1c] sm:$0xf]
    %v697 = vld [vmem:[%s5 + $0x20] sm:$0xf]
    %v698 = vld [vmem:[%s5 + $0x24] sm:$0xf]
    %v699 = vld [vmem:[%s5 + $0x28] sm:$0xf]
    %v700 = vld [vmem:[%s5 + $0x2c] sm:$0xf]
    %v701 = vld [vmem:[%s5 + $0x30] sm:$0xf]
    %v702 = vld [vmem:[%s5 + $0x34] sm:$0xf]
    %v703 = vld [vmem:[%s5 + $0x38] sm:$0xf]
    %v704 = vld [vmem:[%s5 + $0x3c] sm:$0xf]
    %v705 = vld [vmem:[%s6] sm:$0x1]
    %v707 = vlaneseq
    %v708 = vshrl.u32 %v707, 7
    %v709 = vsub.s32 0, %v708
    %v710 = vrot.slane %v705, %v709
    %v728 = vunpack.c.l.b16 %v689
    %v729 = vunpack.c.l.b16 %v690
    %v730 = vunpack.c.l.b16 %v691
    %v731 = vunpack.c.l.b16 %v692
    %v732 = vunpack.c.l.b16 %v693
    %v733 = vunpack.c.l.b16 %v694
    %v734 = vunpack.c.l.b16 %v695
    %v735 = vunpack.c.l.b16 %v696
    %v736 = vunpack.c.l.b16 %v697
    %v737 = vunpack.c.l.b16 %v698
    %v738 = vunpack.c.l.b16 %v699
    %v739 = vunpack.c.l.b16 %v700
    %v740 = vunpack.c.l.b16 %v701
    %v741 = vunpack.c.l.b16 %v702
    %v742 = vunpack.c.l.b16 %v703
    %v743 = vunpack.c.l.b16 %v704
    %v744 = vpack.c.b16 %v729, %v728
    %v745 = vpack.c.b16 %v731, %v730
    %v746 = vpack.c.b16 %v733, %v732
    %v747 = vpack.c.b16 %v735, %v734
    %v748 = vpack.c.b16 %v737, %v736
    %v749 = vpack.c.b16 %v739, %v738
    %v750 = vpack.c.b16 %v741, %v740
    %v751 = vpack.c.b16 %v743, %v742
    %760 = vmatprep.subr.bf16.mxu0 0
    %761 = vmatpush1.bf16.msra.mxu0 %v744
    %762 = vmatprep.subr.bf16.mxu0 0
    %763 = vmatpush1.bf16.msra.mxu0 %v745
    %764 = vmatprep.subr.bf16.mxu0 0
    %765 = vmatpush1.bf16.msra.mxu0 %v746
    %766 = vmatprep.subr.bf16.mxu0 0
    %767 = vmatpush1.bf16.msra.mxu0 %v747
    %768 = vmatprep.subr.bf16.mxu0 0
    %769 = vmatpush1.bf16.msra.mxu0 %v748
    %770 = vmatprep.subr.bf16.mxu0 0
    %771 = vmatpush1.bf16.msra.mxu0 %v749
    %772 = vmatprep.subr.bf16.mxu0 0
    %773 = vmatpush1.bf16.msra.mxu0 %v750
    %774 = vmatprep.subr.bf16.mxu0 0
    %775 = vmatpush1.bf16.msra.mxu0 %v751
    %776 = vmatprep.subr.bf16.mxu0 0
    %777 = vmatpush1.bf16.msra.mxu0 0
    %778 = vmatprep.subr.bf16.mxu0 0
    %779 = vmatpush1.bf16.msra.mxu0 0
    %780 = vmatprep.subr.bf16.mxu0 0
    %781 = vmatpush1.bf16.msra.mxu0 0
    %782 = vmatprep.subr.bf16.mxu0 0
    %783 = vmatpush1.bf16.msra.mxu0 0
    %784 = vmatprep.subr.bf16.mxu0 0
    %785 = vmatpush1.bf16.msra.mxu0 0
    %786 = vmatprep.subr.bf16.mxu0 0
    %787 = vmatpush1.bf16.msra.mxu0 0
    %788 = vmatprep.subr.bf16.mxu0 0
    %789 = vmatpush1.bf16.msra.mxu0 0
    %790 = vmatprep.subr.bf16.mxu0 0
    %791 = vmatpush1.bf16.msra.mxu0 0
    %792 = vmatprep.mubr.f32.mxu0 0.0
    %793 = vmatmul.mubr.f32.gmra.mrb[0].mxu0 %v688
    %v794 = vpop.f32.mrb[0].mxu0
    %v795 = vadd.f32 %v710, %v794
    %v796 = vpop.f32.mrb[0].mxu0
    %797 = vdwg.mxu0
    %v798 = vmax.f32 %v795, 0.0
    %v799 = vld [vmem:[%s7] sm:$0xf]
    %v800 = vld [vmem:[%s7 + $0x4] sm:$0xf]
    %v801 = vld [vmem:[%s7 + $0x8] sm:$0xf]
    %v802 = vld [vmem:[%s7 + $0xc] sm:$0xf]
    %v803 = vld [vmem:[%s7 + $0x10] sm:$0xf]
    %v804 = vld [vmem:[%s7 + $0x14] sm:$0xf]
    %v805 = vld [vmem:[%s7 + $0x18] sm:$0xf]
    %v806 = vld [vmem:[%s7 + $0x1c] sm:$0xf]
    %v807 = vld [vmem:[%s7 + $0x20] sm:$0xf]
    %v808 = vld [vmem:[%s7 + $0x24] sm:$0xf]
    %v809 = vld [vmem:[%s7 + $0x28] sm:$0xf]
    %v810 = vld [vmem:[%s7 + $0x2c] sm:$0xf]
    %v811 = vld [vmem:[%s7 + $0x30] sm:$0xf]
    %v812 = vld [vmem:[%s7 + $0x34] sm:$0xf]
    %v813 = vld [vmem:[%s7 + $0x38] sm:$0xf]
    %v814 = vld [vmem:[%s7 + $0x3c] sm:$0xf]
    %v815 = vld [vmem:[%s8] sm:$0x1]
    %v817 = vlaneseq
    %v818 = vshrl.u32 %v817, 7
    %v819 = vsub.s32 0, %v818
    %v820 = vrot.slane %v815, %v819
    %v838 = vunpack.c.l.b16 %v799
    %v839 = vunpack.c.l.b16 %v800
    %v840 = vunpack.c.l.b16 %v801
    %v841 = vunpack.c.l.b16 %v802
    %v842 = vunpack.c.l.b16 %v803
    %v843 = vunpack.c.l.b16 %v804
    %v844 = vunpack.c.l.b16 %v805
    %v845 = vunpack.c.l.b16 %v806
    %v846 = vunpack.c.l.b16 %v807
    %v847 = vunpack.c.l.b16 %v808
    %v848 = vunpack.c.l.b16 %v809
    %v849 = vunpack.c.l.b16 %v810
    %v850 = vunpack.c.l.b16 %v811
    %v851 = vunpack.c.l.b16 %v812
    %v852 = vunpack.c.l.b16 %v813
    %v853 = vunpack.c.l.b16 %v814
    %v854 = vpack.c.b16 %v839, %v838
    %v855 = vpack.c.b16 %v841, %v840
    %v856 = vpack.c.b16 %v843, %v842
    %v857 = vpack.c.b16 %v845, %v844
    %v858 = vpack.c.b16 %v847, %v846
    %v859 = vpack.c.b16 %v849, %v848
    %v860 = vpack.c.b16 %v851, %v850
    %v861 = vpack.c.b16 %v853, %v852
    %870 = vmatprep.subr.bf16.mxu0 0
    %871 = vmatpush1.bf16.msra.mxu0 %v854
    %872 = vmatprep.subr.bf16.mxu0 0
    %873 = vmatpush1.bf16.msra.mxu0 %v855
    %874 = vmatprep.subr.bf16.mxu0 0
    %875 = vmatpush1.bf16.msra.mxu0 %v856
    %876 = vmatprep.subr.bf16.mxu0 0
    %877 = vmatpush1.bf16.msra.mxu0 %v857
    %878 = vmatprep.subr.bf16.mxu0 0
    %879 = vmatpush1.bf16.msra.mxu0 %v858
    %880 = vmatprep.subr.bf16.mxu0 0
    %881 = vmatpush1.bf16.msra.mxu0 %v859
    %882 = vmatprep.subr.bf16.mxu0 0
    %883 = vmatpush1.bf16.msra.mxu0 %v860
    %884 = vmatprep.subr.bf16.mxu0 0
    %885 = vmatpush1.bf16.msra.mxu0 %v861
    %886 = vmatprep.subr.bf16.mxu0 0
    %887 = vmatpush1.bf16.msra.mxu0 0
    %888 = vmatprep.subr.bf16.mxu0 0
    %889 = vmatpush1.bf16.msra.mxu0 0
    %890 = vmatprep.subr.bf16.mxu0 0
    %891 = vmatpush1.bf16.msra.mxu0 0
    %892 = vmatprep.subr.bf16.mxu0 0
    %893 = vmatpush1.bf16.msra.mxu0 0
    %894 = vmatprep.subr.bf16.mxu0 0
    %895 = vmatpush1.bf16.msra.mxu0 0
    %896 = vmatprep.subr.bf16.mxu0 0
    %897 = vmatpush1.bf16.msra.mxu0 0
    %898 = vmatprep.subr.bf16.mxu0 0
    %899 = vmatpush1.bf16.msra.mxu0 0
    %900 = vmatprep.subr.bf16.mxu0 0
    %901 = vmatpush1.bf16.msra.mxu0 0
    %902 = vmatprep.mubr.f32.mxu0 0.0
    %903 = vmatmul.mubr.f32.gmra.mrb[0].mxu0 %v798
    %v904 = vpop.f32.mrb[0].mxu0
    %v905 = vadd.f32 %v820, %v904
    %v906 = vpop.f32.mrb[0].mxu0
    %907 = vdwg.mxu0
    %v908 = vmax.f32 %v905, 0.0
    %v909 = vld [vmem:[#allocation4] sm:$0xf]
    %v910 = vld [vmem:[#allocation4 + $0x4] sm:$0xf]
    %v911 = vld [vmem:[#allocation4 + $0x8] sm:$0xf]
    %v912 = vld [vmem:[#allocation4 + $0xc] sm:$0xf]
    %v913 = vld [vmem:[#allocation4 + $0x10] sm:$0xf]
    %v914 = vld [vmem:[#allocation4 + $0x14] sm:$0xf]
    %v915 = vld [vmem:[#allocation4 + $0x18] sm:$0xf]
    %v916 = vld [vmem:[#allocation4 + $0x1c] sm:$0xf]
    %v917 = vld [vmem:[#allocation4 + $0x20] sm:$0xf]
    %v918 = vld [vmem:[#allocation4 + $0x24] sm:$0xf]
    %v919 = vld [vmem:[#allocation4 + $0x28] sm:$0xf]
    %v920 = vld [vmem:[#allocation4 + $0x2c] sm:$0xf]
    %v921 = vld [vmem:[#allocation4 + $0x30] sm:$0xf]
    %v922 = vld [vmem:[#allocation4 + $0x34] sm:$0xf]
    %v923 = vld [vmem:[#allocation4 + $0x38] sm:$0xf]
    %v924 = vld [vmem:[#allocation4 + $0x3c] sm:$0xf]
    %v925 = vld [vmem:[%s10] sm:$0x1]
    %v927 = vlaneseq
    %v928 = vshrl.u32 %v927, 7
    %v929 = vsub.s32 0, %v928
    %v930 = vrot.slane %v925, %v929
    %v948 = vunpack.c.l.b16 %v909
    %v949 = vunpack.c.l.b16 %v910
    %v950 = vunpack.c.l.b16 %v911
    %v951 = vunpack.c.l.b16 %v912
    %v952 = vunpack.c.l.b16 %v913
    %v953 = vunpack.c.l.b16 %v914
    %v954 = vunpack.c.l.b16 %v915
    %v955 = vunpack.c.l.b16 %v916
    %v956 = vunpack.c.l.b16 %v917
    %v957 = vunpack.c.l.b16 %v918
    %v958 = vunpack.c.l.b16 %v919
    %v959 = vunpack.c.l.b16 %v920
    %v960 = vunpack.c.l.b16 %v921
    %v961 = vunpack.c.l.b16 %v922
    %v962 = vunpack.c.l.b16 %v923
    %v963 = vunpack.c.l.b16 %v924
    %v964 = vpack.c.b16 %v949, %v948
    %v965 = vpack.c.b16 %v951, %v950
    %v966 = vpack.c.b16 %v953, %v952
    %v967 = vpack.c.b16 %v955, %v954
    %v968 = vpack.c.b16 %v957, %v956
    %v969 = vpack.c.b16 %v959, %v958
    %v970 = vpack.c.b16 %v961, %v960
    %v971 = vpack.c.b16 %v963, %v962
    %980 = vmatprep.subr.bf16.mxu0 0
    %981 = vmatpush1.bf16.msra.mxu0 %v964
    %982 = vmatprep.subr.bf16.mxu0 0
    %983 = vmatpush1.bf16.msra.mxu0 %v965
    %984 = vmatprep.subr.bf16.mxu0 0
    %985 = vmatpush1.bf16.msra.mxu0 %v966
    %986 = vmatprep.subr.bf16.mxu0 0
    %987 = vmatpush1.bf16.msra.mxu0 %v967
    %988 = vmatprep.subr.bf16.mxu0 0
    %989 = vmatpush1.bf16.msra.mxu0 %v968
    %990 = vmatprep.subr.bf16.mxu0 0
    %991 = vmatpush1.bf16.msra.mxu0 %v969
    %992 = vmatprep.subr.bf16.mxu0 0
    %993 = vmatpush1.bf16.msra.mxu0 %v970
    %994 = vmatprep.subr.bf16.mxu0 0
    %995 = vmatpush1.bf16.msra.mxu0 %v971
    %996 = vmatprep.subr.bf16.mxu0 0
    %997 = vmatpush1.bf16.msra.mxu0 0
    %998 = vmatprep.subr.bf16.mxu0 0
    %999 = vmatpush1.bf16.msra.mxu0 0
    %1000 = vmatprep.subr.bf16.mxu0 0
    %1001 = vmatpush1.bf16.msra.mxu0 0
    %1002 = vmatprep.subr.bf16.mxu0 0
    %1003 = vmatpush1.bf16.msra.mxu0 0
    %1004 = vmatprep.subr.bf16.mxu0 0
    %1005 = vmatpush1.bf16.msra.mxu0 0
    %1006 = vmatprep.subr.bf16.mxu0 0
    %1007 = vmatpush1.bf16.msra.mxu0 0
    %1008 = vmatprep.subr.bf16.mxu0 0
    %1009 = vmatpush1.bf16.msra.mxu0 0
    %1010 = vmatprep.subr.bf16.mxu0 0
    %1011 = vmatpush1.bf16.msra.mxu0 0
    %1012 = vmatprep.mubr.f32.mxu0 0.0
    %1013 = vmatmul.mubr.f32.gmra.mrb[0].mxu0 %v908
    %v1014 = vpop.f32.mrb[0].mxu0
    %v1015 = vadd.f32 %v930, %v1014
    %v1016 = vpop.f32.mrb[0].mxu0
    %1017 = vdwg.mxu0
    %1018 = vst [vmem:[%s11] sm:$0xff] %v1015
    // Predicated region
    $region54: #{efficientnet_nn_forward.1} parent=1 // pred_check
      _
    $region55: #{efficientnet_nn_forward.1} parent=1 // pred_check_branch
      %1020 = sbr.rel (0) target = $region57
    $region56: #{efficientnet_nn_forward.1} parent=1 // pred_region
      _
    $region57: #{efficientnet_nn_forward.1} parent=1 // pred_fallthru
      _
    // Predicated region
    $region58: #{efficientnet_nn_forward.1} parent=1 // pred_check
      _
    $region59: #{efficientnet_nn_forward.1} parent=1 // pred_check_branch
      %1022 = sbr.rel (0) target = $region61
    $region60: #{efficientnet_nn_forward.1} parent=1 // pred_region
      _
    $region61: #{efficientnet_nn_forward.1} parent=1 // pred_fallthru
      _
    %1023 = vsyncpa [#allocation3], 1
    %1024 = vsyncpa [#allocation5], 1

</llo_original>
